<compile_context>
chip_gen: v6e
topology: v6e:2x2x1
jax: 0.10.0
libtpu: 0.0.40
codegen_flags: <defaults>
</compile_context>

<pallas_src>
import functools

import jax
import jax.numpy as jnp
import numpy as np
from jax.experimental import pallas as pl
from jax.experimental.pallas import tpu as pltpu

LANE = 128


def _round_up(x, k):
    return (x + k - 1) // k * k


def relation_prob_kernel(ct_ref, cy_ref, ht_ref,
                         wct_ref, wcy_ref, wht_ref, b1_ref,
                         w2_ref, b2_ref, out_ref, *, half):
    # ct/cy/ht : (TB, D) / (TB, m) / (TB, n)     activations (any float dtype)
    # wct/wcy/wht : (D|m|n, 2*half) bf16         [even cols | odd cols], zero padded
    # b1        : (1, 2*half) f32                fused bias (b_ct+b_cy+b_ht), even|odd
    # w2        : (half, Kre) bf16               W_p^T, rows >= mre/2 are zero
    # b2        : (1, Kre) f32
    # out       : (TB, Kre) f32
    wdt = wct_ref.dtype

    # First layer: three partial MXU dots, f32 accumulation.
    acc = jnp.dot(ct_ref[...].astype(wdt), wct_ref[...],
                  preferred_element_type=jnp.float32)
    acc = acc + jnp.dot(cy_ref[...].astype(wdt), wcy_ref[...],
                        preferred_element_type=jnp.float32)
    acc = acc + jnp.dot(ht_ref[...].astype(wdt), wht_ref[...],
                        preferred_element_type=jnp.float32)
    acc = acc + b1_ref[...]                                  # (TB, 2*half) f32

    # Pairwise maxout == out.view(B, -1, 2).max(2)[0].
    # Even/odd features live in the two 128-aligned column halves, so this is
    # a whole-vreg slice + VPU max (no XLU).
    h = jnp.maximum(acc[:, :half], acc[:, half:])            # (TB, half) f32

    # Dropout(p=0.2): identity in eval mode.

    # fc_probility: bf16 MXU dot, f32 accumulate, explicit bias.
    out = jnp.dot(h.astype(wdt), w2_ref[...],
                  preferred_element_type=jnp.float32)
    out_ref[...] = (out + b2_ref[...]).astype(out_ref.dtype)


def prepare_relation_prob_params(p, weight_dtype=jnp.bfloat16):
    """One-time weight preprocessing (hoisted out of the forward hot path).

    Params use the PyTorch convention: W_* is (out_features, in_features),
    b_* is (out_features,)."""
    W_ct, b_ct = p["W_ct"], p["b_ct"]
    W_cy, b_cy = p["W_cy"], p["b_cy"]
    W_ht, b_ht = p["W_ht"], p["b_ht"]
    W_p, b_p = p["W_p"], p["b_p"]

    mre = W_ct.shape[0]
    assert mre % 2 == 0
    half_w = mre // 2
    half_pad = _round_up(half_w, LANE)          # lane-aligned maxout halves
    Kre = W_p.shape[0]

    def pack_first_layer(W):
        # (mre, K_in) -> (K_in, 2*half_pad): [even-row cols | odd-row cols],
        # zero-padded so the maxout split lands on a vreg boundary.
        k_in = W.shape[1]
        blk = jnp.zeros((k_in, 2 * half_pad), jnp.float32)
        blk = blk.at[:, :half_w].set(W[0::2].T.astype(jnp.float32))
        blk = blk.at[:, half_pad:half_pad + half_w].set(W[1::2].T.astype(jnp.float32))
        return blk.astype(weight_dtype)

    b_sum = (b_ct + b_cy + b_ht).astype(jnp.float32)
    b1 = jnp.zeros((1, 2 * half_pad), jnp.float32)
    b1 = b1.at[0, :half_w].set(b_sum[0::2])
    b1 = b1.at[0, half_pad:half_pad + half_w].set(b_sum[1::2])

    # Second layer: rows past mre/2 are zero so the maxout padding contributes 0.
    w2 = jnp.zeros((half_pad, Kre), jnp.float32)
    w2 = w2.at[:half_w, :].set(W_p.T.astype(jnp.float32))
    w2 = w2.astype(weight_dtype)
    b2 = b_p.astype(jnp.float32).reshape(1, Kre)

    return {
        "w_ct": pack_first_layer(W_ct),
        "w_cy": pack_first_layer(W_cy),
        "w_ht": pack_first_layer(W_ht),
        "b1": b1,
        "w2": w2,
        "b2": b2,
        "half_pad": half_pad,
        "Kre": Kre,
    }


def relation_probility(ct, c_y, ht, prep):
    """Forward pass. `prep` comes from prepare_relation_prob_params (called once)."""
    w_ct, w_cy, w_ht = prep["w_ct"], prep["w_cy"], prep["w_ht"]
    b1, w2, b2 = prep["b1"], prep["w2"], prep["b2"]
    half_pad, Kre = prep["half_pad"], prep["Kre"]

    B, D = ct.shape
    m = c_y.shape[1]
    n = ht.shape[1]
    two_half = 2 * half_pad

    # Batch tiling: big tiles to amortize per-grid-step overhead; when B is
    # large, keep >= 2 grid steps so the "parallel" axis can shard across both
    # v7x TensorCores.  Weights stay resident (constant index_map).
    MAX_TB = 1024
    if B <= 256:
        tb = B
    else:
        tb = min(MAX_TB, _round_up(pl.cdiv(B, 2), LANE))
    grid = (pl.cdiv(B, tb),)

    kernel = functools.partial(relation_prob_kernel, half=half_pad)
    out = pl.pallas_call(
        kernel,
        out_shape=jax.ShapeDtypeStruct((B, Kre), jnp.float32),
        grid_spec=pltpu.PrefetchScalarGridSpec(
            num_scalar_prefetch=0,
            grid=grid,
            in_specs=[
                # pipelined activations (true widths; no wrapper-side concat)
                pl.BlockSpec((tb, D), lambda i: (i, 0)),
                pl.BlockSpec((tb, m), lambda i: (i, 0)),
                pl.BlockSpec((tb, n), lambda i: (i, 0)),
                # resident weights / biases
                pl.BlockSpec((D, two_half), lambda i: (0, 0)),
                pl.BlockSpec((m, two_half), lambda i: (0, 0)),
                pl.BlockSpec((n, two_half), lambda i: (0, 0)),
                pl.BlockSpec((1, two_half), lambda i: (0, 0)),
                pl.BlockSpec((half_pad, Kre), lambda i: (0, 0)),
                pl.BlockSpec((1, Kre), lambda i: (0, 0)),
            ],
            out_specs=pl.BlockSpec((tb, Kre), lambda i: (i, 0)),
        ),
        compiler_params=pltpu.CompilerParams(
            dimension_semantics=("parallel",),
            vmem_limit_bytes=32 << 20),
    )(ct, c_y, ht, w_ct, w_cy, w_ht, b1, w2, b2)

    return out


def reference(ct, c_y, ht, p):
    """Pure-JAX f32 reference matching the PyTorch forward (eval mode)."""
    out = ct @ p["W_ct"].T + p["b_ct"] + c_y @ p["W_cy"].T + p["b_cy"] \
        + ht @ p["W_ht"].T + p["b_ht"]
    out = out.reshape(out.shape[0], -1, 2).max(axis=2)
    out = out @ p["W_p"].T + p["b_p"]
    return out


if __name__ == "__main__":
    # params: D, m, n, mre, Kre
    B, D, m, n, mre, Kre = 8, 32, 16, 24, 64, 16

    key = jax.random.PRNGKey(0)
    keys = jax.random.split(key, 12)

    params = {
        "W_ct": jax.random.normal(keys[0], (mre, D), jnp.float32) * 0.1,
        "b_ct": jax.random.normal(keys[1], (mre,), jnp.float32) * 0.1,
        "W_cy": jax.random.normal(keys[2], (mre, m), jnp.float32) * 0.1,
        "b_cy": jax.random.normal(keys[3], (mre,), jnp.float32) * 0.1,
        "W_ht": jax.random.normal(keys[4], (mre, n), jnp.float32) * 0.1,
        "b_ht": jax.random.normal(keys[5], (mre,), jnp.float32) * 0.1,
        "W_p": jax.random.normal(keys[6], (Kre, mre // 2), jnp.float32) * 0.1,
        "b_p": jax.random.normal(keys[7], (Kre,), jnp.float32) * 0.1,
    }

    ct = jax.random.normal(keys[8], (B, D), jnp.float32)
    c_y = jax.random.normal(keys[9], (B, m), jnp.float32)
    ht = jax.random.normal(keys[10], (B, n), jnp.float32)

    # One-time weight preprocessing (not in the per-call hot path).
    prep = prepare_relation_prob_params(params)
    prep = jax.tree_util.tree_map(
        lambda a: jax.block_until_ready(a) if isinstance(a, jax.Array) else a, prep)

    out = relation_probility(ct, c_y, ht, prep)
    out = jax.block_until_ready(out)

    ref = reference(ct, c_y, ht, params)
    assert out.shape == (B, Kre)
    # bf16 matmul path with f32 accumulation -> relaxed tolerance.
    assert np.allclose(np.asarray(out), np.asarray(ref), atol=2e-2, rtol=2e-2)

    print("KERNEL_OK")
</pallas_src>

<mosaic_0001>
module attributes {stable_mosaic.version = 11 : i64} {
  func.func @relation_prob_kernel(%arg0: i32, %arg1: memref<8x32xf32, #tpu.memory_space<vmem>>, %arg2: memref<8x16xf32, #tpu.memory_space<vmem>>, %arg3: memref<8x24xf32, #tpu.memory_space<vmem>>, %arg4: memref<32x256xbf16, #tpu.memory_space<vmem>>, %arg5: memref<16x256xbf16, #tpu.memory_space<vmem>>, %arg6: memref<24x256xbf16, #tpu.memory_space<vmem>>, %arg7: memref<1x256xf32, #tpu.memory_space<vmem>>, %arg8: memref<128x16xbf16, #tpu.memory_space<vmem>>, %arg9: memref<1x16xf32, #tpu.memory_space<vmem>>, %arg10: memref<8x16xf32, #tpu.memory_space<vmem>>) attributes {dimension_semantics = [#tpu.dimension_semantics<parallel>], iteration_bounds = array<i64: 1>, scalar_prefetch = 0 : i64, scratch_operands = 0 : i64, tpu.core_type = #tpu.core_type<tc>, window_params = [{transform_indices = @transform_0, window_bounds = array<i64: 8, 32>}, {transform_indices = @transform_1, window_bounds = array<i64: 8, 16>}, {transform_indices = @transform_2, window_bounds = array<i64: 8, 24>}, {pipeline_mode = #tpu.pipeline_mode<synchronous>, transform_indices = @transform_3, window_bounds = array<i64: 32, 256>}, {pipeline_mode = #tpu.pipeline_mode<synchronous>, transform_indices = @transform_4, window_bounds = array<i64: 16, 256>}, {pipeline_mode = #tpu.pipeline_mode<synchronous>, transform_indices = @transform_5, window_bounds = array<i64: 24, 256>}, {pipeline_mode = #tpu.pipeline_mode<synchronous>, transform_indices = @transform_6, window_bounds = array<i64: 1, 256>}, {pipeline_mode = #tpu.pipeline_mode<synchronous>, transform_indices = @transform_7, window_bounds = array<i64: 128, 16>}, {pipeline_mode = #tpu.pipeline_mode<synchronous>, transform_indices = @transform_8, window_bounds = array<i64: 1, 16>}, {transform_indices = @transform_9, window_bounds = array<i64: 8, 16>}]} {
    %c0 = arith.constant 0 : index
    %c0_0 = arith.constant 0 : index
    %0 = vector.load %arg1[%c0, %c0_0] : memref<8x32xf32, #tpu.memory_space<vmem>>, vector<8x32xf32>
    %1 = arith.truncf %0 : vector<8x32xf32> to vector<8x32xbf16>
    %c0_1 = arith.constant 0 : index
    %c0_2 = arith.constant 0 : index
    %2 = vector.load %arg4[%c0_1, %c0_2] : memref<32x256xbf16, #tpu.memory_space<vmem>>, vector<32x256xbf16>
    %cst = arith.constant dense<0.000000e+00> : vector<8x256xf32>
    %3 = tpu.matmul %1, %2, %cst {dimension_numbers = #tpu.dot_dimension_numbers<[1], [0], [0], [1], [0, 0, 1, 1], [], []>} : vector<8x32xbf16>, vector<32x256xbf16>, vector<8x256xf32> -> vector<8x256xf32>
    %c0_3 = arith.constant 0 : index
    %c0_4 = arith.constant 0 : index
    %4 = vector.load %arg2[%c0_3, %c0_4] : memref<8x16xf32, #tpu.memory_space<vmem>>, vector<8x16xf32>
    %5 = arith.truncf %4 : vector<8x16xf32> to vector<8x16xbf16>
    %c0_5 = arith.constant 0 : index
    %c0_6 = arith.constant 0 : index
    %6 = vector.load %arg5[%c0_5, %c0_6] : memref<16x256xbf16, #tpu.memory_space<vmem>>, vector<16x256xbf16>
    %cst_7 = arith.constant dense<0.000000e+00> : vector<8x256xf32>
    %7 = tpu.matmul %5, %6, %cst_7 {dimension_numbers = #tpu.dot_dimension_numbers<[1], [0], [0], [1], [0, 0, 1, 1], [], []>} : vector<8x16xbf16>, vector<16x256xbf16>, vector<8x256xf32> -> vector<8x256xf32>
    %8 = arith.addf %3, %7 : vector<8x256xf32>
    %c0_8 = arith.constant 0 : index
    %c0_9 = arith.constant 0 : index
    %9 = vector.load %arg3[%c0_8, %c0_9] : memref<8x24xf32, #tpu.memory_space<vmem>>, vector<8x24xf32>
    %10 = arith.truncf %9 : vector<8x24xf32> to vector<8x24xbf16>
    %c0_10 = arith.constant 0 : index
    %c0_11 = arith.constant 0 : index
    %11 = vector.load %arg6[%c0_10, %c0_11] : memref<24x256xbf16, #tpu.memory_space<vmem>>, vector<24x256xbf16>
    %cst_12 = arith.constant dense<0.000000e+00> : vector<8x256xf32>
    %12 = tpu.matmul %10, %11, %cst_12 {dimension_numbers = #tpu.dot_dimension_numbers<[1], [0], [0], [1], [0, 0, 1, 1], [], []>} : vector<8x24xbf16>, vector<24x256xbf16>, vector<8x256xf32> -> vector<8x256xf32>
    %13 = arith.addf %8, %12 : vector<8x256xf32>
    %c0_13 = arith.constant 0 : index
    %c0_14 = arith.constant 0 : index
    %14 = vector.load %arg7[%c0_13, %c0_14] : memref<1x256xf32, #tpu.memory_space<vmem>>, vector<1x256xf32>
    %15 = vector.broadcast %14 : vector<1x256xf32> to vector<8x256xf32>
    %16 = arith.addf %13, %15 : vector<8x256xf32>
    %17 = vector.extract_strided_slice %16 {offsets = [0, 0], sizes = [8, 128], strides = [1, 1]} : vector<8x256xf32> to vector<8x128xf32>
    %18 = vector.extract_strided_slice %16 {offsets = [0, 128], sizes = [8, 128], strides = [1, 1]} : vector<8x256xf32> to vector<8x128xf32>
    %19 = arith.maximumf %17, %18 : vector<8x128xf32>
    %20 = arith.truncf %19 : vector<8x128xf32> to vector<8x128xbf16>
    %c0_15 = arith.constant 0 : index
    %c0_16 = arith.constant 0 : index
    %21 = vector.load %arg8[%c0_15, %c0_16] : memref<128x16xbf16, #tpu.memory_space<vmem>>, vector<128x16xbf16>
    %cst_17 = arith.constant dense<0.000000e+00> : vector<8x16xf32>
    %22 = tpu.matmul %20, %21, %cst_17 {dimension_numbers = #tpu.dot_dimension_numbers<[1], [0], [0], [1], [0, 0, 1, 1], [], []>} : vector<8x128xbf16>, vector<128x16xbf16>, vector<8x16xf32> -> vector<8x16xf32>
    %c0_18 = arith.constant 0 : index
    %c0_19 = arith.constant 0 : index
    %23 = vector.load %arg9[%c0_18, %c0_19] : memref<1x16xf32, #tpu.memory_space<vmem>>, vector<1x16xf32>
    %24 = vector.broadcast %23 : vector<1x16xf32> to vector<8x16xf32>
    %25 = arith.addf %22, %24 : vector<8x16xf32>
    %c0_20 = arith.constant 0 : index
    %c0_21 = arith.constant 0 : index
    %26 = vector.load %arg10[%c0_20, %c0_21] : memref<8x16xf32, #tpu.memory_space<vmem>>, vector<8x16xf32>
    tpu.vector_store %arg10[%c0_20, %c0_21], %25 {strides = array<i32>} : memref<8x16xf32, #tpu.memory_space<vmem>>, vector<8x16xf32>,
    return
  }
  func.func @transform_0(%arg0: i32) -> (i32, i32) {
    %c0_i32 = arith.constant 0 : i32
    %c0_i32_0 = arith.constant 0 : i32
    return %arg0, %c0_i32 : i32, i32
  }
  func.func @transform_1(%arg0: i32) -> (i32, i32) {
    %c0_i32 = arith.constant 0 : i32
    %c0_i32_0 = arith.constant 0 : i32
    return %arg0, %c0_i32 : i32, i32
  }
  func.func @transform_2(%arg0: i32) -> (i32, i32) {
    %c0_i32 = arith.constant 0 : i32
    %c0_i32_0 = arith.constant 0 : i32
    return %arg0, %c0_i32 : i32, i32
  }
  func.func @transform_3(%arg0: i32) -> (i32, i32) {
    %c0_i32 = arith.constant 0 : i32
    %c0_i32_0 = arith.constant 0 : i32
    %c0_i32_1 = arith.constant 0 : i32
    return %c0_i32, %c0_i32_0 : i32, i32
  }
  func.func @transform_4(%arg0: i32) -> (i32, i32) {
    %c0_i32 = arith.constant 0 : i32
    %c0_i32_0 = arith.constant 0 : i32
    %c0_i32_1 = arith.constant 0 : i32
    return %c0_i32, %c0_i32_0 : i32, i32
  }
  func.func @transform_5(%arg0: i32) -> (i32, i32) {
    %c0_i32 = arith.constant 0 : i32
    %c0_i32_0 = arith.constant 0 : i32
    %c0_i32_1 = arith.constant 0 : i32
    return %c0_i32, %c0_i32_0 : i32, i32
  }
  func.func @transform_6(%arg0: i32) -> (i32, i32) {
    %c0_i32 = arith.constant 0 : i32
    %c0_i32_0 = arith.constant 0 : i32
    %c0_i32_1 = arith.constant 0 : i32
    return %c0_i32, %c0_i32_0 : i32, i32
  }
  func.func @transform_7(%arg0: i32) -> (i32, i32) {
    %c0_i32 = arith.constant 0 : i32
    %c0_i32_0 = arith.constant 0 : i32
    %c0_i32_1 = arith.constant 0 : i32
    return %c0_i32, %c0_i32_0 : i32, i32
  }
  func.func @transform_8(%arg0: i32) -> (i32, i32) {
    %c0_i32 = arith.constant 0 : i32
    %c0_i32_0 = arith.constant 0 : i32
    %c0_i32_1 = arith.constant 0 : i32
    return %c0_i32, %c0_i32_0 : i32, i32
  }
  func.func @transform_9(%arg0: i32) -> (i32, i32) {
    %c0_i32 = arith.constant 0 : i32
    %c0_i32_0 = arith.constant 0 : i32
    return %arg0, %c0_i32 : i32, i32
  }
}

</mosaic_0001>

<llo_original>
// kernel: tpu_custom_call.1
$region0: #{tpu_custom_call.1}
  #allocation0 [shape = 'u32[]', space=smem, size = 0x4, offset = 0x4, fixed_abs, tag = 'smem constant byte address 0x4 - core index']
  #allocation1 [shape = 'u32[144,128]{1,0:T(1,128)}', space=vmem, size = 0x12000, scoped, tag = 'internal scratch']
  %s0 = inlined_call_operand.hbm [shape: f32[8,32], index: 0, kind: input, shape index: {}]
  %s1 = inlined_call_operand.hbm [shape: f32[8,16], index: 1, kind: input, shape index: {}]
  %s2 = inlined_call_operand.hbm [shape: f32[8,24], index: 2, kind: input, shape index: {}]
  %s3 = inlined_call_operand.vmem [shape: bf16[32,256], index: 3, kind: input, shape index: {}]
  %s4 = inlined_call_operand.vmem [shape: bf16[16,256], index: 4, kind: input, shape index: {}]
  %s5 = inlined_call_operand.vmem [shape: bf16[24,256], index: 5, kind: input, shape index: {}]
  %s6 = inlined_call_operand.vmem [shape: f32[1,256], index: 6, kind: input, shape index: {}]
  %s7 = inlined_call_operand.vmem [shape: bf16[128,16], index: 7, kind: input, shape index: {}]
  %s8 = inlined_call_operand.vmem [shape: f32[1,16], index: 8, kind: input, shape index: {}]
  %s9 = inlined_call_operand.hbm [shape: f32[8,16], index: 9, kind: output, shape index: {}]
  %s10 = sld [smem:[#allocation0]]
  $region58: #{tpu_custom_call.1} parent=0
    _
  %s12 = ssub.s32 1, %s10
  %s13 = scalar_select 0, %s12, %s10
  $region1: #{tpu_custom_call.1} parent=0
    #allocation2 [shape = 'u8[4096]{0}', space=vmem, size = 0x1000, scoped, tag = 'input window, operand 0, single buffered']
    #allocation3 [shape = 's32[1]{0}', space=sflag, size = 0x4, scoped, tag = 'scoped memory for tpu_custom_call.1']
    #allocation4 [shape = 's32[1]{0}', space=sflag, size = 0x4, scoped, tag = 'scoped memory for tpu_custom_call.1']
    #allocation5 [shape = 'u8[4096]{0}', space=vmem, size = 0x1000, scoped, tag = 'input window, operand 1, single buffered']
    #allocation6 [shape = 's32[1]{0}', space=sflag, size = 0x4, scoped, tag = 'scoped memory for tpu_custom_call.1']
    #allocation7 [shape = 'u8[4096]{0}', space=vmem, size = 0x1000, scoped, tag = 'input window, operand 2, single buffered']
    #allocation8 [shape = 'u8[4096]{0}', space=vmem, size = 0x1000, scoped, tag = 'output window, operand 0, single buffered']
    %14 = vsyncpa [#allocation3], 0
    %15 = vsyncpa [#allocation6], 0
    %16 = vsyncpa [#allocation4], 0
    // Predicated region
    $region2: #{tpu_custom_call.1} parent=1 // pred_check
      _
    $region3: #{tpu_custom_call.1} parent=1 // pred_check_branch
      %18 = sbr.rel (0) target = $region5
    $region4: #{tpu_custom_call.1} parent=1 // pred_region
      %s20 = ssub.s32 128, 128
      %21 = vsyncadd [#allocation3], %s20
      %s23 = sshll.u32 [#allocation2], 4
      %s24 = int_to_ptr.vmem [resolvable:$true] %s23
      %26 = dma.hbm_to_vmem [thread:$0]  %s0, 128, %s24, [#allocation3]
    $region5: #{tpu_custom_call.1} parent=1 // pred_fallthru
      _
    // Predicated region
    $region6: #{tpu_custom_call.1} parent=1 // pred_check
      _
    $region7: #{tpu_custom_call.1} parent=1 // pred_check_branch
      %28 = sbr.rel (0) target = $region9
    $region8: #{tpu_custom_call.1} parent=1 // pred_region
      %s30 = ssub.s32 128, 128
      %31 = vsyncadd [#allocation6], %s30
      %s33 = sshll.u32 [#allocation5], 4
      %s34 = int_to_ptr.vmem [resolvable:$true] %s33
      %36 = dma.hbm_to_vmem [thread:$0]  %s1, 128, %s34, [#allocation6]
    $region9: #{tpu_custom_call.1} parent=1 // pred_fallthru
      _
    // Predicated region
    $region10: #{tpu_custom_call.1} parent=1 // pred_check
      _
    $region11: #{tpu_custom_call.1} parent=1 // pred_check_branch
      %38 = sbr.rel (0) target = $region13
    $region12: #{tpu_custom_call.1} parent=1 // pred_region
      %s40 = ssub.s32 128, 128
      %41 = vsyncadd [#allocation6], %s40
      %s43 = sshll.u32 [#allocation7], 4
      %s44 = int_to_ptr.vmem [resolvable:$true] %s43
      %46 = dma.hbm_to_vmem [thread:$0]  %s2, 128, %s44, [#allocation6]
    $region13: #{tpu_custom_call.1} parent=1 // pred_fallthru
      _
    // Predicated region
    $region14: #{tpu_custom_call.1} parent=1 // pred_check
      _
    $region15: #{tpu_custom_call.1} parent=1 // pred_check_branch
      %48 = sbr.rel (0) target = $region17
    $region16: #{tpu_custom_call.1} parent=1 // pred_region
      _
    $region17: #{tpu_custom_call.1} parent=1 // pred_fallthru
      _
    // Predicated region
    $region18: #{tpu_custom_call.1} parent=1 // pred_check
      _
    $region19: #{tpu_custom_call.1} parent=1 // pred_check_branch
      %50 = sbr.rel (0) target = $region21
    $region20: #{tpu_custom_call.1} parent=1 // pred_region
      _
    $region21: #{tpu_custom_call.1} parent=1 // pred_fallthru
      _
    // Predicated region
    $region22: #{tpu_custom_call.1} parent=1 // pred_check
      _
    $region23: #{tpu_custom_call.1} parent=1 // pred_check_branch
      %52 = sbr.rel (0) target = $region25
    $region24: #{tpu_custom_call.1} parent=1 // pred_region
      _
    $region25: #{tpu_custom_call.1} parent=1 // pred_fallthru
      _
    // Predicated region
    $region26: #{tpu_custom_call.1} parent=1 // pred_check
      _
    $region27: #{tpu_custom_call.1} parent=1 // pred_check_branch
      %54 = sbr.rel (0) target = $region29
    $region28: #{tpu_custom_call.1} parent=1 // pred_region
      _
    $region29: #{tpu_custom_call.1} parent=1 // pred_fallthru
      _
    // Predicated region
    $region30: #{tpu_custom_call.1} parent=1 // pred_check
      _
    $region31: #{tpu_custom_call.1} parent=1 // pred_check_branch
      %56 = sbr.rel (0) target = $region33
    $region32: #{tpu_custom_call.1} parent=1 // pred_region
      _
    $region33: #{tpu_custom_call.1} parent=1 // pred_fallthru
      _
    // Predicated region
    $region34: #{tpu_custom_call.1} parent=1 // pred_check
      _
    $region35: #{tpu_custom_call.1} parent=1 // pred_check_branch
      %58 = sbr.rel (0) target = $region37
    $region36: #{tpu_custom_call.1} parent=1 // pred_region
      _
    $region37: #{tpu_custom_call.1} parent=1 // pred_fallthru
      _
    // Predicated region
    $region38: #{tpu_custom_call.1} parent=1 // pred_check
      _
    $region39: #{tpu_custom_call.1} parent=1 // pred_check_branch
      %60 = sbr.rel (0) target = $region41
    $region40: #{tpu_custom_call.1} parent=1 // pred_region
      %61 = dma.done [#allocation3], 128
    $region41: #{tpu_custom_call.1} parent=1 // pred_fallthru
      _
    // Predicated region
    $region42: #{tpu_custom_call.1} parent=1 // pred_check
      _
    $region43: #{tpu_custom_call.1} parent=1 // pred_check_branch
      %63 = sbr.rel (0) target = $region45
    $region44: #{tpu_custom_call.1} parent=1 // pred_region
      %64 = dma.done [#allocation6], 128
    $region45: #{tpu_custom_call.1} parent=1 // pred_fallthru
      _
    // Predicated region
    $region46: #{tpu_custom_call.1} parent=1 // pred_check
      _
    $region47: #{tpu_custom_call.1} parent=1 // pred_check_branch
      %66 = sbr.rel (0) target = $region49
    $region48: #{tpu_custom_call.1} parent=1 // pred_region
      %67 = dma.done [#allocation6], 128
    $region49: #{tpu_custom_call.1} parent=1 // pred_fallthru
      _
    %v69 = vld [vmem:[#allocation2] sm:$0xff]
    %v70 = vpack.c.bf16 %v69, %v69
    %v71 = vld [vmem:[%s3] sm:$0xff]
    %v72 = vld [vmem:[%s3 + $0x8] sm:$0xff]
    %v73 = vld [vmem:[%s3 + $0x10] sm:$0xff]
    %v74 = vld [vmem:[%s3 + $0x18] sm:$0xff]
    %v75 = vld [vmem:[#allocation5] sm:$0xff]
    %v76 = vpack.c.bf16 %v75, %v75
    %v77 = vld [vmem:[%s4] sm:$0xff]
    %v78 = vld [vmem:[%s4 + $0x8] sm:$0xff]
    %v81 = vunpack.c.l.b16 %v77
    %v82 = vunpack.c.h.b16 %v77
    %v83 = vunpack.c.l.b16 %v78
    %v84 = vunpack.c.h.b16 %v78
    %v85 = vpack.c.b16 %v83, %v81
    %v86 = vpack.c.b16 %v84, %v82
    %vm89 = vcmask 130048
    %v91 = vsel %vm89, %v76, 0
    %93 = vmatprep.subr.bf16.mxu0 0
    %94 = vmatpush1.bf16.msra.mxu0 0
    %95 = vmatprep.subr.bf16.mxu0 0
    %96 = vmatpush1.bf16.msra.mxu0 0
    %97 = vmatprep.subr.bf16.mxu0 0
    %98 = vmatpush1.bf16.msra.mxu0 0
    %99 = vmatprep.subr.bf16.mxu0 0
    %100 = vmatpush1.bf16.msra.mxu0 0
    %101 = vmatprep.subr.bf16.mxu0 0
    %102 = vmatpush1.bf16.msra.mxu0 0
    %103 = vmatprep.subr.bf16.mxu0 0
    %104 = vmatpush1.bf16.msra.mxu0 0
    %105 = vmatprep.subr.bf16.mxu0 0
    %106 = vmatpush1.bf16.msra.mxu0 0
    %107 = vmatprep.subr.bf16.mxu0 %v86
    %108 = vmatpush1.bf16.msra.mxu0 %v85
    %109 = vmatprep.subr.bf16.mxu0 0
    %110 = vmatpush2.bf16.msra.mxu0 0
    %111 = vmatprep.subr.bf16.mxu0 0
    %112 = vmatpush2.bf16.msra.mxu0 0
    %113 = vmatprep.subr.bf16.mxu0 0
    %114 = vmatpush2.bf16.msra.mxu0 0
    %115 = vmatprep.subr.bf16.mxu0 0
    %116 = vmatpush2.bf16.msra.mxu0 0
    %117 = vmatprep.subr.bf16.mxu0 0
    %118 = vmatpush2.bf16.msra.mxu0 0
    %119 = vmatprep.subr.bf16.mxu0 0
    %120 = vmatpush2.bf16.msra.mxu0 0
    %121 = vmatprep.subr.bf16.mxu0 0
    %122 = vmatpush2.bf16.msra.mxu0 0
    %123 = vmatprep.subr.bf16.mxu0 0
    %124 = vmatpush2.bf16.msra.mxu0 0
    %125 = vmatprep.mubr.bf16.mxu0 0
    %126 = vmatmul.mubr.bf16.gmra.mxu0 %v91
    %v127 = vpop.f32.mrf.mxu0
    %v128 = vadd.f32 0.0, %v127
    %v129 = vpop.f32.mrf.mxu0
    %v130 = vadd.f32 0.0, %v129
    %v131 = vpop.f32.mrf.mxu0
    %v132 = vpop.f32.mrf.mxu0
    %133 = vdwg.mxu0
    %v138 = vunpack.c.l.b16 %v71
    %v139 = vunpack.c.h.b16 %v71
    %v140 = vunpack.c.l.b16 %v72
    %v141 = vunpack.c.h.b16 %v72
    %v142 = vunpack.c.l.b16 %v73
    %v143 = vunpack.c.h.b16 %v73
    %v144 = vunpack.c.l.b16 %v74
    %v145 = vunpack.c.h.b16 %v74
    %v146 = vpack.c.b16 %v140, %v138
    %v147 = vpack.c.b16 %v141, %v139
    %v148 = vpack.c.b16 %v144, %v142
    %v149 = vpack.c.b16 %v145, %v143
    %vm154 = vcmask 261120
    %v156 = vsel %vm154, %v70, 0
    %158 = vmatprep.subr.bf16.mxu0 0
    %159 = vmatpush1.bf16.msra.mxu0 0
    %160 = vmatprep.subr.bf16.mxu0 0
    %161 = vmatpush1.bf16.msra.mxu0 0
    %162 = vmatprep.subr.bf16.mxu0 0
    %163 = vmatpush1.bf16.msra.mxu0 0
    %164 = vmatprep.subr.bf16.mxu0 0
    %165 = vmatpush1.bf16.msra.mxu0 0
    %166 = vmatprep.subr.bf16.mxu0 0
    %167 = vmatpush1.bf16.msra.mxu0 0
    %168 = vmatprep.subr.bf16.mxu0 0
    %169 = vmatpush1.bf16.msra.mxu0 0
    %170 = vmatprep.subr.bf16.mxu0 %v149
    %171 = vmatpush1.bf16.msra.mxu0 %v148
    %172 = vmatprep.subr.bf16.mxu0 %v147
    %173 = vmatpush1.bf16.msra.mxu0 %v146
    %174 = vmatprep.subr.bf16.mxu0 0
    %175 = vmatpush2.bf16.msra.mxu0 0
    %176 = vmatprep.subr.bf16.mxu0 0
    %177 = vmatpush2.bf16.msra.mxu0 0
    %178 = vmatprep.subr.bf16.mxu0 0
    %179 = vmatpush2.bf16.msra.mxu0 0
    %180 = vmatprep.subr.bf16.mxu0 0
    %181 = vmatpush2.bf16.msra.mxu0 0
    %182 = vmatprep.subr.bf16.mxu0 0
    %183 = vmatpush2.bf16.msra.mxu0 0
    %184 = vmatprep.subr.bf16.mxu0 0
    %185 = vmatpush2.bf16.msra.mxu0 0
    %186 = vmatprep.subr.bf16.mxu0 0
    %187 = vmatpush2.bf16.msra.mxu0 0
    %188 = vmatprep.subr.bf16.mxu0 0
    %189 = vmatpush2.bf16.msra.mxu0 0
    %190 = vmatprep.mubr.bf16.mxu0 0
    %191 = vmatmul.mubr.bf16.gmra.mxu0 %v156
    %v192 = vpop.f32.mrf.mxu0
    %v193 = vadd.f32 %v128, %v192
    %v194 = vpop.f32.mrf.mxu0
    %v195 = vadd.f32 %v130, %v194
    %v196 = vpop.f32.mrf.mxu0
    %v197 = vpop.f32.mrf.mxu0
    %198 = vdwg.mxu0
    %v199 = vld [vmem:[#allocation7] sm:$0xff]
    %v200 = vpack.c.bf16 %v199, %v199
    %v201 = vld [vmem:[%s5] sm:$0xff]
    %v202 = vld [vmem:[%s5 + $0x8] sm:$0xff]
    %v203 = vld [vmem:[%s5 + $0x10] sm:$0xff]
    %v207 = vunpack.c.l.b16 %v201
    %v208 = vunpack.c.h.b16 %v201
    %v209 = vunpack.c.l.b16 %v202
    %v210 = vunpack.c.h.b16 %v202
    %v211 = vunpack.c.l.b16 %v203
    %v212 = vunpack.c.h.b16 %v203
    %v213 = vpack.c.b16 %v209, %v207
    %v214 = vpack.c.b16 %v210, %v208
    %v215 = vpack.c.b16 %v211, %v211
    %v216 = vpack.c.b16 %v212, %v212
    %vm219 = vcmask 195584
    %v221 = vsel %vm219, %v200, 0
    %vm223 = vcmask 1043456
    %v225 = vsel %vm223, %v215, 0
    %v228 = vsel %vm223, %v216, 0
    %230 = vmatprep.subr.bf16.mxu0 0
    %231 = vmatpush1.bf16.msra.mxu0 0
    %232 = vmatprep.subr.bf16.mxu0 0
    %233 = vmatpush1.bf16.msra.mxu0 0
    %234 = vmatprep.subr.bf16.mxu0 0
    %235 = vmatpush1.bf16.msra.mxu0 0
    %236 = vmatprep.subr.bf16.mxu0 0
    %237 = vmatpush1.bf16.msra.mxu0 0
    %238 = vmatprep.subr.bf16.mxu0 0
    %239 = vmatpush1.bf16.msra.mxu0 0
    %240 = vmatprep.subr.bf16.mxu0 0
    %241 = vmatpush1.bf16.msra.mxu0 0
    %242 = vmatprep.subr.bf16.mxu0 %v228
    %243 = vmatpush1.bf16.msra.mxu0 %v225
    %244 = vmatprep.subr.bf16.mxu0 %v214
    %245 = vmatpush1.bf16.msra.mxu0 %v213
    %246 = vmatprep.subr.bf16.mxu0 0
    %247 = vmatpush2.bf16.msra.mxu0 0
    %248 = vmatprep.subr.bf16.mxu0 0
    %249 = vmatpush2.bf16.msra.mxu0 0
    %250 = vmatprep.subr.bf16.mxu0 0
    %251 = vmatpush2.bf16.msra.mxu0 0
    %252 = vmatprep.subr.bf16.mxu0 0
    %253 = vmatpush2.bf16.msra.mxu0 0
    %254 = vmatprep.subr.bf16.mxu0 0
    %255 = vmatpush2.bf16.msra.mxu0 0
    %256 = vmatprep.subr.bf16.mxu0 0
    %257 = vmatpush2.bf16.msra.mxu0 0
    %258 = vmatprep.subr.bf16.mxu0 0
    %259 = vmatpush2.bf16.msra.mxu0 0
    %260 = vmatprep.subr.bf16.mxu0 0
    %261 = vmatpush2.bf16.msra.mxu0 0
    %262 = vmatprep.mubr.bf16.mxu0 0
    %263 = vmatmul.mubr.bf16.gmra.mxu0 %v221
    %v264 = vpop.f32.mrf.mxu0
    %v265 = vadd.f32 0.0, %v264
    %v266 = vpop.f32.mrf.mxu0
    %v267 = vadd.f32 0.0, %v266
    %v268 = vpop.f32.mrf.mxu0
    %v269 = vpop.f32.mrf.mxu0
    %270 = vdwg.mxu0
    %v271 = vadd.f32 %v193, %v265
    %v272 = vadd.f32 %v195, %v267
    %v273 = vld [vmem:[%s6] sm:$0x3]
    %v275 = vlaneseq
    %v276 = vshrl.u32 %v275, 7
    %v277 = vsub.s32 0, %v276
    %v278 = vrot.slane %v273, %v277
    %v279 = vlaneseq
    %v280 = vshrl.u32 %v279, 7
    %v281 = vsub.s32 1, %v280
    %v282 = vrot.slane %v273, %v281
    %v285 = vadd.f32 %v271, %v278
    %v286 = vadd.f32 %v272, %v282
    %v287 = vmax.f32 %v285, %v286
    %v288 = vpack.c.bf16 %v287, %v287
    %v289 = vld [vmem:[%s7] sm:$0xf]
    %v290 = vld [vmem:[%s7 + $0x4] sm:$0xf]
    %v291 = vld [vmem:[%s7 + $0x8] sm:$0xf]
    %v292 = vld [vmem:[%s7 + $0xc] sm:$0xf]
    %v293 = vld [vmem:[%s7 + $0x10] sm:$0xf]
    %v294 = vld [vmem:[%s7 + $0x14] sm:$0xf]
    %v295 = vld [vmem:[%s7 + $0x18] sm:$0xf]
    %v296 = vld [vmem:[%s7 + $0x1c] sm:$0xf]
    %v297 = vld [vmem:[%s7 + $0x20] sm:$0xf]
    %v298 = vld [vmem:[%s7 + $0x24] sm:$0xf]
    %v299 = vld [vmem:[%s7 + $0x28] sm:$0xf]
    %v300 = vld [vmem:[%s7 + $0x2c] sm:$0xf]
    %v301 = vld [vmem:[%s7 + $0x30] sm:$0xf]
    %v302 = vld [vmem:[%s7 + $0x34] sm:$0xf]
    %v303 = vld [vmem:[%s7 + $0x38] sm:$0xf]
    %v304 = vld [vmem:[%s7 + $0x3c] sm:$0xf]
    %v305 = vld [vmem:[%s8] sm:$0x1]
    %v307 = vlaneseq
    %v308 = vshrl.u32 %v307, 7
    %v309 = vsub.s32 0, %v308
    %v310 = vrot.slane %v305, %v309
    %v328 = vunpack.c.l.b16 %v289
    %v329 = vunpack.c.l.b16 %v290
    %v330 = vunpack.c.l.b16 %v291
    %v331 = vunpack.c.l.b16 %v292
    %v332 = vunpack.c.l.b16 %v293
    %v333 = vunpack.c.l.b16 %v294
    %v334 = vunpack.c.l.b16 %v295
    %v335 = vunpack.c.l.b16 %v296
    %v336 = vunpack.c.l.b16 %v297
    %v337 = vunpack.c.l.b16 %v298
    %v338 = vunpack.c.l.b16 %v299
    %v339 = vunpack.c.l.b16 %v300
    %v340 = vunpack.c.l.b16 %v301
    %v341 = vunpack.c.l.b16 %v302
    %v342 = vunpack.c.l.b16 %v303
    %v343 = vunpack.c.l.b16 %v304
    %v344 = vpack.c.b16 %v329, %v328
    %v345 = vpack.c.b16 %v331, %v330
    %v346 = vpack.c.b16 %v333, %v332
    %v347 = vpack.c.b16 %v335, %v334
    %v348 = vpack.c.b16 %v337, %v336
    %v349 = vpack.c.b16 %v339, %v338
    %v350 = vpack.c.b16 %v341, %v340
    %v351 = vpack.c.b16 %v343, %v342
    %360 = vmatprep.subr.bf16.mxu0 0
    %361 = vmatpush1.bf16.msra.mxu0 %v351
    %362 = vmatprep.subr.bf16.mxu0 0
    %363 = vmatpush1.bf16.msra.mxu0 %v350
    %364 = vmatprep.subr.bf16.mxu0 0
    %365 = vmatpush1.bf16.msra.mxu0 %v349
    %366 = vmatprep.subr.bf16.mxu0 0
    %367 = vmatpush1.bf16.msra.mxu0 %v348
    %368 = vmatprep.subr.bf16.mxu0 0
    %369 = vmatpush1.bf16.msra.mxu0 %v347
    %370 = vmatprep.subr.bf16.mxu0 0
    %371 = vmatpush1.bf16.msra.mxu0 %v346
    %372 = vmatprep.subr.bf16.mxu0 0
    %373 = vmatpush1.bf16.msra.mxu0 %v345
    %374 = vmatprep.subr.bf16.mxu0 0
    %375 = vmatpush1.bf16.msra.mxu0 %v344
    %376 = vmatprep.subr.bf16.mxu0 0
    %377 = vmatpush2.bf16.msra.mxu0 0
    %378 = vmatprep.subr.bf16.mxu0 0
    %379 = vmatpush2.bf16.msra.mxu0 0
    %380 = vmatprep.subr.bf16.mxu0 0
    %381 = vmatpush2.bf16.msra.mxu0 0
    %382 = vmatprep.subr.bf16.mxu0 0
    %383 = vmatpush2.bf16.msra.mxu0 0
    %384 = vmatprep.subr.bf16.mxu0 0
    %385 = vmatpush2.bf16.msra.mxu0 0
    %386 = vmatprep.subr.bf16.mxu0 0
    %387 = vmatpush2.bf16.msra.mxu0 0
    %388 = vmatprep.subr.bf16.mxu0 0
    %389 = vmatpush2.bf16.msra.mxu0 0
    %390 = vmatprep.subr.bf16.mxu0 0
    %391 = vmatpush2.bf16.msra.mxu0 0
    %392 = vmatprep.mubr.bf16.mxu0 0
    %393 = vmatmul.mubr.bf16.gmra.mxu0 %v288
    %v394 = vpop.f32.mrf.mxu0
    %v395 = vadd.f32 %v310, %v394
    %v396 = vpop.f32.mrf.mxu0
    %v397 = vpop.f32.mrf.mxu0
    %v398 = vpop.f32.mrf.mxu0
    %399 = vdwg.mxu0
    %400 = vst.msk [vmem:[#allocation8] sm:$0xff] %vm89, %v395
    // Predicated region
    $region50: #{tpu_custom_call.1} parent=1 // pred_check
      _
    $region51: #{tpu_custom_call.1} parent=1 // pred_check_branch
      %402 = sbr.rel (0) target = $region53
    $region52: #{tpu_custom_call.1} parent=1 // pred_region
      %s404 = ssub.s32 128, 128
      %405 = vsyncadd [#allocation4], %s404
      %s407 = sshll.u32 [#allocation8], 4
      %s408 = int_to_ptr.vmem [resolvable:$true] %s407
      %410 = dma.vmem_to_hbm [thread:$0]  %s408, 128, %s9, [#allocation4]
    $region53: #{tpu_custom_call.1} parent=1 // pred_fallthru
      _
    // Predicated region
    $region54: #{tpu_custom_call.1} parent=1 // pred_check
      _
    $region55: #{tpu_custom_call.1} parent=1 // pred_check_branch
      %412 = sbr.rel (0) target = $region57
    $region56: #{tpu_custom_call.1} parent=1 // pred_region
      %413 = dma.done [#allocation4], 128
    $region57: #{tpu_custom_call.1} parent=1 // pred_fallthru
      _
    %414 = vsyncpa [#allocation3], 1
    %415 = vsyncpa [#allocation6], 1
    %416 = vsyncpa [#allocation4], 1

</llo_original>
